<compile_context>
chip_gen: v6e
topology: v6e:2x2x1
jax: 0.10.0
libtpu: 0.0.40
codegen_flags: <defaults>
</compile_context>

<pallas_src>
from functools import partial

import jax
import jax.numpy as jnp
from jax.experimental import pallas as pl
from jax.experimental.pallas import tpu as pltpu

LANE = 128  # TPU lane width; fc output is padded to this for a dense store.


def _lstm_kernel(x_ref, wih_ref, whh_ref, b_ref, wfc_ref, bfc_ref, y_ref,
                 *, seq_len, batch):
    """Single-invocation LSTM recurrence + fused lane-padded Linear head.

    x_ref   : (seq_len * batch, D)  bf16   time-major, flattened
    wih_ref : (D, 4H)               bf16
    whh_ref : (H, 4H)               bf16
    b_ref   : (1, 4H)               f32    (b_ih + b_hh)
    wfc_ref : (H, 128)              bf16   fc weight^T, zero-padded on lanes
    bfc_ref : (1, 128)              f32    fc bias, zero-padded on lanes
    y_ref   : (batch, 128)          f32    fc output; lane 0 is the real value
    """
    H = whh_ref.shape[0]

    # Time-parallel input projection: ONE MXU matmul for all timesteps.
    gates_x = (jnp.dot(x_ref[...], wih_ref[...],
                       preferred_element_type=jnp.float32)
               + b_ref[...])                                   # (S*B, 4H) f32

    h = jnp.zeros((batch, H), jnp.float32)
    c = jnp.zeros((batch, H), jnp.float32)

    # seq_len is small and static -> fully unrolled serial recurrence.
    for t in range(seq_len):
        # Kept as add-of-dot so Mosaic can target in-place MXU accumulation
        # (MRB) on v7x; on v5e/v6e this is the usual pop-then-add.
        g = (gates_x[t * batch:(t + 1) * batch, :]
             + jnp.dot(h.astype(whh_ref.dtype), whh_ref[...],
                       preferred_element_type=jnp.float32))    # (B, 4H) f32

        # Two full-vreg EUP pushes (sigmoid / tanh over all 4H lanes) instead
        # of four dependent sub-vreg transcendentals; gates are then selected
        # by cheap static lane slices.
        sg = jax.nn.sigmoid(g)
        tg = jnp.tanh(g)
        i_g = sg[:, 0 * H:1 * H]
        f_g = sg[:, 1 * H:2 * H]
        g_g = tg[:, 2 * H:3 * H]
        o_g = sg[:, 3 * H:4 * H]

        c = f_g * c + i_g * g_g
        h = o_g * jnp.tanh(c)

    # Fused, lane-dense final Linear: (B, H) @ (H, 128) + bias.  Only lane 0
    # carries the real Linear(H -> 1) result; the rest are zero columns, so the
    # store is a full-width unmasked vst instead of a 1-lane masked store.
    y_ref[...] = (jnp.dot(h.astype(wfc_ref.dtype), wfc_ref[...],
                          preferred_element_type=jnp.float32)
                  + bfc_ref[...])


def prepare_params(w_ih, w_hh, b_ih, b_hh, w_fc, b_fc):
    """One-time weight layout (hoisted out of the per-call path).

    Returns MXU-ready arrays: transposed bf16 LSTM weights, combined f32 bias
    row, and the lane-padded fc weight / bias.
    """
    H = w_hh.shape[1]
    O = w_fc.shape[0]
    assert w_ih.shape[0] == 4 * H and w_hh.shape == (4 * H, H)
    assert O <= LANE

    wih_t = jnp.transpose(w_ih).astype(jnp.bfloat16)                  # (D, 4H)
    whh_t = jnp.transpose(w_hh).astype(jnp.bfloat16)                  # (H, 4H)
    bias = (b_ih + b_hh).reshape(1, 4 * H).astype(jnp.float32)        # (1, 4H)
    wfc_pad = (jnp.zeros((H, LANE), jnp.float32)
               .at[:, :O].set(jnp.transpose(w_fc))
               .astype(jnp.bfloat16))                                 # (H, 128)
    bfc_pad = jnp.zeros((1, LANE), jnp.float32).at[0, :O].set(b_fc)   # (1, 128)
    return (wih_t, whh_t, bias, wfc_pad, bfc_pad)


@partial(jax.jit, static_argnames=("out_dim",))
def lstm_forward(x, params, *, out_dim=1):
    """x: (batch, seq, input_dim) f32, params from prepare_params()
    -> (batch, out_dim) f32, matching the PyTorch module's forward (eval)."""
    wih_t, whh_t, bias, wfc_pad, bfc_pad = params
    B, S, D = x.shape
    H = whh_t.shape[0]

    # Pad batch to a multiple of 8 (f32 sublane) so state tiles are full vregs.
    Bp = ((B + 7) // 8) * 8
    x_tm = jnp.transpose(x, (1, 0, 2))                        # (S, B, D) time-major
    if Bp != B:
        x_tm = jnp.pad(x_tm, ((0, 0), (0, Bp - B), (0, 0)))
    x_flat = x_tm.reshape(S * Bp, D).astype(jnp.bfloat16)     # (S*Bp, D)

    vmem = pl.BlockSpec(memory_space=pltpu.MemorySpace.VMEM)
    y_pad = pl.pallas_call(
        partial(_lstm_kernel, seq_len=S, batch=Bp),
        out_shape=jax.ShapeDtypeStruct((Bp, LANE), jnp.float32),
        in_specs=[vmem] * 6,
        out_specs=vmem,
    )(x_flat, wih_t, whh_t, bias, wfc_pad, bfc_pad)

    # Drop batch padding and the zero lanes of the padded fc output.
    return y_pad[:B, :out_dim]


def _lstm_reference(x, w_ih, w_hh, b_ih, b_hh, w_fc, b_fc, emulate_bf16):
    """Pure-JAX reference matching torch.nn.LSTM semantics (gate order i,f,g,o)."""
    B, S, D = x.shape
    H = w_hh.shape[1]
    lo = jnp.bfloat16 if emulate_bf16 else jnp.float32
    xl = x.astype(lo)
    wih = w_ih.astype(lo)
    whh = w_hh.astype(lo)
    bias = (b_ih + b_hh).astype(jnp.float32)
    h = jnp.zeros((B, H), jnp.float32)
    c = jnp.zeros((B, H), jnp.float32)
    for t in range(S):
        g = (jnp.dot(xl[:, t, :], wih.T, preferred_element_type=jnp.float32)
             + jnp.dot(h.astype(lo), whh.T, preferred_element_type=jnp.float32)
             + bias)
        i = jax.nn.sigmoid(g[:, 0 * H:1 * H])
        f = jax.nn.sigmoid(g[:, 1 * H:2 * H])
        gg = jnp.tanh(g[:, 2 * H:3 * H])
        o = jax.nn.sigmoid(g[:, 3 * H:4 * H])
        c = f * c + i * gg
        h = o * jnp.tanh(c)
    y = (jnp.dot(h.astype(lo), w_fc.astype(lo).T,
                 preferred_element_type=jnp.float32)
         + b_fc.astype(jnp.float32))
    return y


if __name__ == "__main__":
    # Small shapes consistent with the module: batch=2, seq=8, input_dim=4,
    # hidden_dim=32, output_dim=1.
    B, S, D, H, O = 2, 8, 4, 32, 1

    key = jax.random.PRNGKey(0)
    ks = jax.random.split(key, 7)
    scale = 1.0 / (H ** 0.5)   # mimics PyTorch's uniform(-1/sqrt(H), 1/sqrt(H))
    x = jax.random.normal(ks[0], (B, S, D), jnp.float32)
    w_ih = jax.random.uniform(ks[1], (4 * H, D), jnp.float32, -scale, scale)
    w_hh = jax.random.uniform(ks[2], (4 * H, H), jnp.float32, -scale, scale)
    b_ih = jax.random.uniform(ks[3], (4 * H,), jnp.float32, -scale, scale)
    b_hh = jax.random.uniform(ks[4], (4 * H,), jnp.float32, -scale, scale)
    w_fc = jax.random.uniform(ks[5], (O, H), jnp.float32, -scale, scale)
    b_fc = jax.random.uniform(ks[6], (O,), jnp.float32, -scale, scale)

    # Weight layout precomputed once (hoisted out of the per-call path).
    params = prepare_params(w_ih, w_hh, b_ih, b_hh, w_fc, b_fc)
    params = jax.block_until_ready(params)

    y = lstm_forward(x, params, out_dim=O)
    y = jax.block_until_ready(y)
    assert y.shape == (B, O)

    # Tight check against a reference that emulates the kernel's bf16 operands
    # (bf16 MXU inputs, f32 accumulation and f32 gate/state math).
    y_ref_bf16 = _lstm_reference(x, w_ih, w_hh, b_ih, b_hh, w_fc, b_fc,
                                 emulate_bf16=True)
    assert jnp.allclose(y, y_ref_bf16, atol=2e-4, rtol=2e-4), (y, y_ref_bf16)

    # Loose cross-check against the full-f32 PyTorch-semantics reference.
    # NOTE: the kernel uses bf16 matmul operands; strict f32 parity with
    # torch.nn.LSTM is only to ~5e-2 here (acceptable for inference).
    y_ref_f32 = _lstm_reference(x, w_ih, w_hh, b_ih, b_hh, w_fc, b_fc,
                                emulate_bf16=False)
    assert jnp.allclose(y, y_ref_f32, atol=5e-2, rtol=5e-2), (y, y_ref_f32)

    print("KERNEL_OK")
</pallas_src>

<mosaic_0001>
module attributes {stable_mosaic.version = 11 : i64} {
  func.func @_lstm_kernel(%arg0: memref<64x4xbf16, #tpu.memory_space<vmem>>, %arg1: memref<4x128xbf16, #tpu.memory_space<vmem>>, %arg2: memref<32x128xbf16, #tpu.memory_space<vmem>>, %arg3: memref<1x128xf32, #tpu.memory_space<vmem>>, %arg4: memref<32x128xbf16, #tpu.memory_space<vmem>>, %arg5: memref<1x128xf32, #tpu.memory_space<vmem>>, %arg6: memref<8x128xf32, #tpu.memory_space<vmem>>) attributes {dimension_semantics = [], scalar_prefetch = 0 : i64, scratch_operands = 0 : i64, tpu.core_type = #tpu.core_type<tc>} {
    %c0 = arith.constant 0 : index
    %c0_0 = arith.constant 0 : index
    %0 = vector.load %arg0[%c0, %c0_0] : memref<64x4xbf16, #tpu.memory_space<vmem>>, vector<64x4xbf16>
    %c0_1 = arith.constant 0 : index
    %c0_2 = arith.constant 0 : index
    %1 = vector.load %arg1[%c0_1, %c0_2] : memref<4x128xbf16, #tpu.memory_space<vmem>>, vector<4x128xbf16>
    %cst = arith.constant dense<0.000000e+00> : vector<64x128xf32>
    %2 = tpu.matmul %0, %1, %cst {dimension_numbers = #tpu.dot_dimension_numbers<[1], [0], [0], [1], [0, 0, 1, 1], [], []>} : vector<64x4xbf16>, vector<4x128xbf16>, vector<64x128xf32> -> vector<64x128xf32>
    %c0_3 = arith.constant 0 : index
    %c0_4 = arith.constant 0 : index
    %3 = vector.load %arg3[%c0_3, %c0_4] : memref<1x128xf32, #tpu.memory_space<vmem>>, vector<1x128xf32>
    %4 = vector.broadcast %3 : vector<1x128xf32> to vector<64x128xf32>
    %5 = arith.addf %2, %4 : vector<64x128xf32>
    %cst_5 = arith.constant 0.000000e+00 : f32
    %6 = vector.broadcast %cst_5 : f32 to vector<8x32xf32>
    %cst_6 = arith.constant 0.000000e+00 : f32
    %7 = vector.broadcast %cst_6 : f32 to vector<8x32xf32>
    %8 = vector.extract_strided_slice %5 {offsets = [0, 0], sizes = [8, 128], strides = [1, 1]} : vector<64x128xf32> to vector<8x128xf32>
    %9 = arith.truncf %6 : vector<8x32xf32> to vector<8x32xbf16>
    %c0_7 = arith.constant 0 : index
    %c0_8 = arith.constant 0 : index
    %10 = vector.load %arg2[%c0_7, %c0_8] : memref<32x128xbf16, #tpu.memory_space<vmem>>, vector<32x128xbf16>
    %cst_9 = arith.constant dense<0.000000e+00> : vector<8x128xf32>
    %11 = tpu.matmul %9, %10, %cst_9 {dimension_numbers = #tpu.dot_dimension_numbers<[1], [0], [0], [1], [0, 0, 1, 1], [], []>} : vector<8x32xbf16>, vector<32x128xbf16>, vector<8x128xf32> -> vector<8x128xf32>
    %12 = arith.addf %8, %11 : vector<8x128xf32>
    %13 = arith.negf %12 : vector<8x128xf32>
    %14 = math.exp %13 : vector<8x128xf32>
    %cst_10 = arith.constant 1.000000e+00 : f32
    %15 = vector.broadcast %cst_10 : f32 to vector<8x128xf32>
    %16 = arith.addf %15, %14 : vector<8x128xf32>
    %17 = arith.divf %15, %16 : vector<8x128xf32>
    %18 = math.tanh %12 : vector<8x128xf32>
    %19 = vector.extract_strided_slice %17 {offsets = [0, 0], sizes = [8, 32], strides = [1, 1]} : vector<8x128xf32> to vector<8x32xf32>
    %20 = vector.extract_strided_slice %17 {offsets = [0, 32], sizes = [8, 32], strides = [1, 1]} : vector<8x128xf32> to vector<8x32xf32>
    %21 = vector.extract_strided_slice %18 {offsets = [0, 64], sizes = [8, 32], strides = [1, 1]} : vector<8x128xf32> to vector<8x32xf32>
    %22 = vector.extract_strided_slice %17 {offsets = [0, 96], sizes = [8, 32], strides = [1, 1]} : vector<8x128xf32> to vector<8x32xf32>
    %23 = arith.mulf %20, %7 : vector<8x32xf32>
    %24 = arith.mulf %19, %21 : vector<8x32xf32>
    %25 = arith.addf %23, %24 : vector<8x32xf32>
    %26 = math.tanh %25 : vector<8x32xf32>
    %27 = arith.mulf %22, %26 : vector<8x32xf32>
    %28 = vector.extract_strided_slice %5 {offsets = [8, 0], sizes = [8, 128], strides = [1, 1]} : vector<64x128xf32> to vector<8x128xf32>
    %29 = arith.truncf %27 : vector<8x32xf32> to vector<8x32xbf16>
    %c0_11 = arith.constant 0 : index
    %c0_12 = arith.constant 0 : index
    %30 = vector.load %arg2[%c0_11, %c0_12] : memref<32x128xbf16, #tpu.memory_space<vmem>>, vector<32x128xbf16>
    %cst_13 = arith.constant dense<0.000000e+00> : vector<8x128xf32>
    %31 = tpu.matmul %29, %30, %cst_13 {dimension_numbers = #tpu.dot_dimension_numbers<[1], [0], [0], [1], [0, 0, 1, 1], [], []>} : vector<8x32xbf16>, vector<32x128xbf16>, vector<8x128xf32> -> vector<8x128xf32>
    %32 = arith.addf %28, %31 : vector<8x128xf32>
    %33 = arith.negf %32 : vector<8x128xf32>
    %34 = math.exp %33 : vector<8x128xf32>
    %cst_14 = arith.constant 1.000000e+00 : f32
    %35 = vector.broadcast %cst_14 : f32 to vector<8x128xf32>
    %36 = arith.addf %35, %34 : vector<8x128xf32>
    %37 = arith.divf %35, %36 : vector<8x128xf32>
    %38 = math.tanh %32 : vector<8x128xf32>
    %39 = vector.extract_strided_slice %37 {offsets = [0, 0], sizes = [8, 32], strides = [1, 1]} : vector<8x128xf32> to vector<8x32xf32>
    %40 = vector.extract_strided_slice %37 {offsets = [0, 32], sizes = [8, 32], strides = [1, 1]} : vector<8x128xf32> to vector<8x32xf32>
    %41 = vector.extract_strided_slice %38 {offsets = [0, 64], sizes = [8, 32], strides = [1, 1]} : vector<8x128xf32> to vector<8x32xf32>
    %42 = vector.extract_strided_slice %37 {offsets = [0, 96], sizes = [8, 32], strides = [1, 1]} : vector<8x128xf32> to vector<8x32xf32>
    %43 = arith.mulf %40, %25 : vector<8x32xf32>
    %44 = arith.mulf %39, %41 : vector<8x32xf32>
    %45 = arith.addf %43, %44 : vector<8x32xf32>
    %46 = math.tanh %45 : vector<8x32xf32>
    %47 = arith.mulf %42, %46 : vector<8x32xf32>
    %48 = vector.extract_strided_slice %5 {offsets = [16, 0], sizes = [8, 128], strides = [1, 1]} : vector<64x128xf32> to vector<8x128xf32>
    %49 = arith.truncf %47 : vector<8x32xf32> to vector<8x32xbf16>
    %c0_15 = arith.constant 0 : index
    %c0_16 = arith.constant 0 : index
    %50 = vector.load %arg2[%c0_15, %c0_16] : memref<32x128xbf16, #tpu.memory_space<vmem>>, vector<32x128xbf16>
    %cst_17 = arith.constant dense<0.000000e+00> : vector<8x128xf32>
    %51 = tpu.matmul %49, %50, %cst_17 {dimension_numbers = #tpu.dot_dimension_numbers<[1], [0], [0], [1], [0, 0, 1, 1], [], []>} : vector<8x32xbf16>, vector<32x128xbf16>, vector<8x128xf32> -> vector<8x128xf32>
    %52 = arith.addf %48, %51 : vector<8x128xf32>
    %53 = arith.negf %52 : vector<8x128xf32>
    %54 = math.exp %53 : vector<8x128xf32>
    %cst_18 = arith.constant 1.000000e+00 : f32
    %55 = vector.broadcast %cst_18 : f32 to vector<8x128xf32>
    %56 = arith.addf %55, %54 : vector<8x128xf32>
    %57 = arith.divf %55, %56 : vector<8x128xf32>
    %58 = math.tanh %52 : vector<8x128xf32>
    %59 = vector.extract_strided_slice %57 {offsets = [0, 0], sizes = [8, 32], strides = [1, 1]} : vector<8x128xf32> to vector<8x32xf32>
    %60 = vector.extract_strided_slice %57 {offsets = [0, 32], sizes = [8, 32], strides = [1, 1]} : vector<8x128xf32> to vector<8x32xf32>
    %61 = vector.extract_strided_slice %58 {offsets = [0, 64], sizes = [8, 32], strides = [1, 1]} : vector<8x128xf32> to vector<8x32xf32>
    %62 = vector.extract_strided_slice %57 {offsets = [0, 96], sizes = [8, 32], strides = [1, 1]} : vector<8x128xf32> to vector<8x32xf32>
    %63 = arith.mulf %60, %45 : vector<8x32xf32>
    %64 = arith.mulf %59, %61 : vector<8x32xf32>
    %65 = arith.addf %63, %64 : vector<8x32xf32>
    %66 = math.tanh %65 : vector<8x32xf32>
    %67 = arith.mulf %62, %66 : vector<8x32xf32>
    %68 = vector.extract_strided_slice %5 {offsets = [24, 0], sizes = [8, 128], strides = [1, 1]} : vector<64x128xf32> to vector<8x128xf32>
    %69 = arith.truncf %67 : vector<8x32xf32> to vector<8x32xbf16>
    %c0_19 = arith.constant 0 : index
    %c0_20 = arith.constant 0 : index
    %70 = vector.load %arg2[%c0_19, %c0_20] : memref<32x128xbf16, #tpu.memory_space<vmem>>, vector<32x128xbf16>
    %cst_21 = arith.constant dense<0.000000e+00> : vector<8x128xf32>
    %71 = tpu.matmul %69, %70, %cst_21 {dimension_numbers = #tpu.dot_dimension_numbers<[1], [0], [0], [1], [0, 0, 1, 1], [], []>} : vector<8x32xbf16>, vector<32x128xbf16>, vector<8x128xf32> -> vector<8x128xf32>
    %72 = arith.addf %68, %71 : vector<8x128xf32>
    %73 = arith.negf %72 : vector<8x128xf32>
    %74 = math.exp %73 : vector<8x128xf32>
    %cst_22 = arith.constant 1.000000e+00 : f32
    %75 = vector.broadcast %cst_22 : f32 to vector<8x128xf32>
    %76 = arith.addf %75, %74 : vector<8x128xf32>
    %77 = arith.divf %75, %76 : vector<8x128xf32>
    %78 = math.tanh %72 : vector<8x128xf32>
    %79 = vector.extract_strided_slice %77 {offsets = [0, 0], sizes = [8, 32], strides = [1, 1]} : vector<8x128xf32> to vector<8x32xf32>
    %80 = vector.extract_strided_slice %77 {offsets = [0, 32], sizes = [8, 32], strides = [1, 1]} : vector<8x128xf32> to vector<8x32xf32>
    %81 = vector.extract_strided_slice %78 {offsets = [0, 64], sizes = [8, 32], strides = [1, 1]} : vector<8x128xf32> to vector<8x32xf32>
    %82 = vector.extract_strided_slice %77 {offsets = [0, 96], sizes = [8, 32], strides = [1, 1]} : vector<8x128xf32> to vector<8x32xf32>
    %83 = arith.mulf %80, %65 : vector<8x32xf32>
    %84 = arith.mulf %79, %81 : vector<8x32xf32>
    %85 = arith.addf %83, %84 : vector<8x32xf32>
    %86 = math.tanh %85 : vector<8x32xf32>
    %87 = arith.mulf %82, %86 : vector<8x32xf32>
    %88 = vector.extract_strided_slice %5 {offsets = [32, 0], sizes = [8, 128], strides = [1, 1]} : vector<64x128xf32> to vector<8x128xf32>
    %89 = arith.truncf %87 : vector<8x32xf32> to vector<8x32xbf16>
    %c0_23 = arith.constant 0 : index
    %c0_24 = arith.constant 0 : index
    %90 = vector.load %arg2[%c0_23, %c0_24] : memref<32x128xbf16, #tpu.memory_space<vmem>>, vector<32x128xbf16>
    %cst_25 = arith.constant dense<0.000000e+00> : vector<8x128xf32>
    %91 = tpu.matmul %89, %90, %cst_25 {dimension_numbers = #tpu.dot_dimension_numbers<[1], [0], [0], [1], [0, 0, 1, 1], [], []>} : vector<8x32xbf16>, vector<32x128xbf16>, vector<8x128xf32> -> vector<8x128xf32>
    %92 = arith.addf %88, %91 : vector<8x128xf32>
    %93 = arith.negf %92 : vector<8x128xf32>
    %94 = math.exp %93 : vector<8x128xf32>
    %cst_26 = arith.constant 1.000000e+00 : f32
    %95 = vector.broadcast %cst_26 : f32 to vector<8x128xf32>
    %96 = arith.addf %95, %94 : vector<8x128xf32>
    %97 = arith.divf %95, %96 : vector<8x128xf32>
    %98 = math.tanh %92 : vector<8x128xf32>
    %99 = vector.extract_strided_slice %97 {offsets = [0, 0], sizes = [8, 32], strides = [1, 1]} : vector<8x128xf32> to vector<8x32xf32>
    %100 = vector.extract_strided_slice %97 {offsets = [0, 32], sizes = [8, 32], strides = [1, 1]} : vector<8x128xf32> to vector<8x32xf32>
    %101 = vector.extract_strided_slice %98 {offsets = [0, 64], sizes = [8, 32], strides = [1, 1]} : vector<8x128xf32> to vector<8x32xf32>
    %102 = vector.extract_strided_slice %97 {offsets = [0, 96], sizes = [8, 32], strides = [1, 1]} : vector<8x128xf32> to vector<8x32xf32>
    %103 = arith.mulf %100, %85 : vector<8x32xf32>
    %104 = arith.mulf %99, %101 : vector<8x32xf32>
    %105 = arith.addf %103, %104 : vector<8x32xf32>
    %106 = math.tanh %105 : vector<8x32xf32>
    %107 = arith.mulf %102, %106 : vector<8x32xf32>
    %108 = vector.extract_strided_slice %5 {offsets = [40, 0], sizes = [8, 128], strides = [1, 1]} : vector<64x128xf32> to vector<8x128xf32>
    %109 = arith.truncf %107 : vector<8x32xf32> to vector<8x32xbf16>
    %c0_27 = arith.constant 0 : index
    %c0_28 = arith.constant 0 : index
    %110 = vector.load %arg2[%c0_27, %c0_28] : memref<32x128xbf16, #tpu.memory_space<vmem>>, vector<32x128xbf16>
    %cst_29 = arith.constant dense<0.000000e+00> : vector<8x128xf32>
    %111 = tpu.matmul %109, %110, %cst_29 {dimension_numbers = #tpu.dot_dimension_numbers<[1], [0], [0], [1], [0, 0, 1, 1], [], []>} : vector<8x32xbf16>, vector<32x128xbf16>, vector<8x128xf32> -> vector<8x128xf32>
    %112 = arith.addf %108, %111 : vector<8x128xf32>
    %113 = arith.negf %112 : vector<8x128xf32>
    %114 = math.exp %113 : vector<8x128xf32>
    %cst_30 = arith.constant 1.000000e+00 : f32
    %115 = vector.broadcast %cst_30 : f32 to vector<8x128xf32>
    %116 = arith.addf %115, %114 : vector<8x128xf32>
    %117 = arith.divf %115, %116 : vector<8x128xf32>
    %118 = math.tanh %112 : vector<8x128xf32>
    %119 = vector.extract_strided_slice %117 {offsets = [0, 0], sizes = [8, 32], strides = [1, 1]} : vector<8x128xf32> to vector<8x32xf32>
    %120 = vector.extract_strided_slice %117 {offsets = [0, 32], sizes = [8, 32], strides = [1, 1]} : vector<8x128xf32> to vector<8x32xf32>
    %121 = vector.extract_strided_slice %118 {offsets = [0, 64], sizes = [8, 32], strides = [1, 1]} : vector<8x128xf32> to vector<8x32xf32>
    %122 = vector.extract_strided_slice %117 {offsets = [0, 96], sizes = [8, 32], strides = [1, 1]} : vector<8x128xf32> to vector<8x32xf32>
    %123 = arith.mulf %120, %105 : vector<8x32xf32>
    %124 = arith.mulf %119, %121 : vector<8x32xf32>
    %125 = arith.addf %123, %124 : vector<8x32xf32>
    %126 = math.tanh %125 : vector<8x32xf32>
    %127 = arith.mulf %122, %126 : vector<8x32xf32>
    %128 = vector.extract_strided_slice %5 {offsets = [48, 0], sizes = [8, 128], strides = [1, 1]} : vector<64x128xf32> to vector<8x128xf32>
    %129 = arith.truncf %127 : vector<8x32xf32> to vector<8x32xbf16>
    %c0_31 = arith.constant 0 : index
    %c0_32 = arith.constant 0 : index
    %130 = vector.load %arg2[%c0_31, %c0_32] : memref<32x128xbf16, #tpu.memory_space<vmem>>, vector<32x128xbf16>
    %cst_33 = arith.constant dense<0.000000e+00> : vector<8x128xf32>
    %131 = tpu.matmul %129, %130, %cst_33 {dimension_numbers = #tpu.dot_dimension_numbers<[1], [0], [0], [1], [0, 0, 1, 1], [], []>} : vector<8x32xbf16>, vector<32x128xbf16>, vector<8x128xf32> -> vector<8x128xf32>
    %132 = arith.addf %128, %131 : vector<8x128xf32>
    %133 = arith.negf %132 : vector<8x128xf32>
    %134 = math.exp %133 : vector<8x128xf32>
    %cst_34 = arith.constant 1.000000e+00 : f32
    %135 = vector.broadcast %cst_34 : f32 to vector<8x128xf32>
    %136 = arith.addf %135, %134 : vector<8x128xf32>
    %137 = arith.divf %135, %136 : vector<8x128xf32>
    %138 = math.tanh %132 : vector<8x128xf32>
    %139 = vector.extract_strided_slice %137 {offsets = [0, 0], sizes = [8, 32], strides = [1, 1]} : vector<8x128xf32> to vector<8x32xf32>
    %140 = vector.extract_strided_slice %137 {offsets = [0, 32], sizes = [8, 32], strides = [1, 1]} : vector<8x128xf32> to vector<8x32xf32>
    %141 = vector.extract_strided_slice %138 {offsets = [0, 64], sizes = [8, 32], strides = [1, 1]} : vector<8x128xf32> to vector<8x32xf32>
    %142 = vector.extract_strided_slice %137 {offsets = [0, 96], sizes = [8, 32], strides = [1, 1]} : vector<8x128xf32> to vector<8x32xf32>
    %143 = arith.mulf %140, %125 : vector<8x32xf32>
    %144 = arith.mulf %139, %141 : vector<8x32xf32>
    %145 = arith.addf %143, %144 : vector<8x32xf32>
    %146 = math.tanh %145 : vector<8x32xf32>
    %147 = arith.mulf %142, %146 : vector<8x32xf32>
    %148 = vector.extract_strided_slice %5 {offsets = [56, 0], sizes = [8, 128], strides = [1, 1]} : vector<64x128xf32> to vector<8x128xf32>
    %149 = arith.truncf %147 : vector<8x32xf32> to vector<8x32xbf16>
    %c0_35 = arith.constant 0 : index
    %c0_36 = arith.constant 0 : index
    %150 = vector.load %arg2[%c0_35, %c0_36] : memref<32x128xbf16, #tpu.memory_space<vmem>>, vector<32x128xbf16>
    %cst_37 = arith.constant dense<0.000000e+00> : vector<8x128xf32>
    %151 = tpu.matmul %149, %150, %cst_37 {dimension_numbers = #tpu.dot_dimension_numbers<[1], [0], [0], [1], [0, 0, 1, 1], [], []>} : vector<8x32xbf16>, vector<32x128xbf16>, vector<8x128xf32> -> vector<8x128xf32>
    %152 = arith.addf %148, %151 : vector<8x128xf32>
    %153 = arith.negf %152 : vector<8x128xf32>
    %154 = math.exp %153 : vector<8x128xf32>
    %cst_38 = arith.constant 1.000000e+00 : f32
    %155 = vector.broadcast %cst_38 : f32 to vector<8x128xf32>
    %156 = arith.addf %155, %154 : vector<8x128xf32>
    %157 = arith.divf %155, %156 : vector<8x128xf32>
    %158 = math.tanh %152 : vector<8x128xf32>
    %159 = vector.extract_strided_slice %157 {offsets = [0, 0], sizes = [8, 32], strides = [1, 1]} : vector<8x128xf32> to vector<8x32xf32>
    %160 = vector.extract_strided_slice %157 {offsets = [0, 32], sizes = [8, 32], strides = [1, 1]} : vector<8x128xf32> to vector<8x32xf32>
    %161 = vector.extract_strided_slice %158 {offsets = [0, 64], sizes = [8, 32], strides = [1, 1]} : vector<8x128xf32> to vector<8x32xf32>
    %162 = vector.extract_strided_slice %157 {offsets = [0, 96], sizes = [8, 32], strides = [1, 1]} : vector<8x128xf32> to vector<8x32xf32>
    %163 = arith.mulf %160, %145 : vector<8x32xf32>
    %164 = arith.mulf %159, %161 : vector<8x32xf32>
    %165 = arith.addf %163, %164 : vector<8x32xf32>
    %166 = math.tanh %165 : vector<8x32xf32>
    %167 = arith.mulf %162, %166 : vector<8x32xf32>
    %168 = arith.truncf %167 : vector<8x32xf32> to vector<8x32xbf16>
    %c0_39 = arith.constant 0 : index
    %c0_40 = arith.constant 0 : index
    %169 = vector.load %arg4[%c0_39, %c0_40] : memref<32x128xbf16, #tpu.memory_space<vmem>>, vector<32x128xbf16>
    %cst_41 = arith.constant dense<0.000000e+00> : vector<8x128xf32>
    %170 = tpu.matmul %168, %169, %cst_41 {dimension_numbers = #tpu.dot_dimension_numbers<[1], [0], [0], [1], [0, 0, 1, 1], [], []>} : vector<8x32xbf16>, vector<32x128xbf16>, vector<8x128xf32> -> vector<8x128xf32>
    %c0_42 = arith.constant 0 : index
    %c0_43 = arith.constant 0 : index
    %171 = vector.load %arg5[%c0_42, %c0_43] : memref<1x128xf32, #tpu.memory_space<vmem>>, vector<1x128xf32>
    %172 = vector.broadcast %171 : vector<1x128xf32> to vector<8x128xf32>
    %173 = arith.addf %170, %172 : vector<8x128xf32>
    %c0_44 = arith.constant 0 : index
    %c0_45 = arith.constant 0 : index
    %174 = vector.load %arg6[%c0_44, %c0_45] : memref<8x128xf32, #tpu.memory_space<vmem>>, vector<8x128xf32>
    tpu.vector_store %arg6[%c0_44, %c0_45], %173 {strides = array<i32>} : memref<8x128xf32, #tpu.memory_space<vmem>>, vector<8x128xf32>,
    return
  }
}

</mosaic_0001>

<llo_original>
// kernel: lstm_forward.1
$region0: #{lstm_forward.1}
  #allocation0 [shape = 'u32[]', space=smem, size = 0x4, offset = 0x4, fixed_abs, tag = 'smem constant byte address 0x4 - core index']
  #allocation1 [shape = 'u32[144,128]{1,0:T(1,128)}', space=vmem, size = 0x12000, scoped, tag = 'internal scratch']
  %s0 = inlined_call_operand.vmem [shape: bf16[64,4], index: 0, kind: input, shape index: {}]
  %s1 = inlined_call_operand.vmem [shape: bf16[4,128], index: 1, kind: input, shape index: {}]
  %s2 = inlined_call_operand.vmem [shape: bf16[32,128], index: 2, kind: input, shape index: {}]
  %s3 = inlined_call_operand.vmem [shape: f32[1,128], index: 3, kind: input, shape index: {}]
  %s4 = inlined_call_operand.vmem [shape: bf16[32,128], index: 4, kind: input, shape index: {}]
  %s5 = inlined_call_operand.vmem [shape: f32[1,128], index: 5, kind: input, shape index: {}]
  %s6 = inlined_call_operand.vmem [shape: f32[8,128], index: 6, kind: output, shape index: {}]
  %s7 = sld [smem:[#allocation0]]
  $region34: #{lstm_forward.1} parent=0
    _
  %s9 = ssub.s32 1, %s7
  %s10 = scalar_select 0, %s9, %s7
  // Predicated region
  $region2: #{lstm_forward.1} parent=0 // pred_check
    _
  $region3: #{lstm_forward.1} parent=0 // pred_check_branch
    %12 = sbr.rel (0) target = $region5
  $region4: #{lstm_forward.1} parent=0 // pred_region
    _
  $region5: #{lstm_forward.1} parent=0 // pred_fallthru
    _
  // Predicated region
  $region6: #{lstm_forward.1} parent=0 // pred_check
    _
  $region7: #{lstm_forward.1} parent=0 // pred_check_branch
    %14 = sbr.rel (0) target = $region9
  $region8: #{lstm_forward.1} parent=0 // pred_region
    _
  $region9: #{lstm_forward.1} parent=0 // pred_fallthru
    _
  // Predicated region
  $region10: #{lstm_forward.1} parent=0 // pred_check
    _
  $region11: #{lstm_forward.1} parent=0 // pred_check_branch
    %16 = sbr.rel (0) target = $region13
  $region12: #{lstm_forward.1} parent=0 // pred_region
    _
  $region13: #{lstm_forward.1} parent=0 // pred_fallthru
    _
  // Predicated region
  $region14: #{lstm_forward.1} parent=0 // pred_check
    _
  $region15: #{lstm_forward.1} parent=0 // pred_check_branch
    %18 = sbr.rel (0) target = $region17
  $region16: #{lstm_forward.1} parent=0 // pred_region
    _
  $region17: #{lstm_forward.1} parent=0 // pred_fallthru
    _
  // Predicated region
  $region18: #{lstm_forward.1} parent=0 // pred_check
    _
  $region19: #{lstm_forward.1} parent=0 // pred_check_branch
    %20 = sbr.rel (0) target = $region21
  $region20: #{lstm_forward.1} parent=0 // pred_region
    _
  $region21: #{lstm_forward.1} parent=0 // pred_fallthru
    _
  // Predicated region
  $region22: #{lstm_forward.1} parent=0 // pred_check
    _
  $region23: #{lstm_forward.1} parent=0 // pred_check_branch
    %22 = sbr.rel (0) target = $region25
  $region24: #{lstm_forward.1} parent=0 // pred_region
    _
  $region25: #{lstm_forward.1} parent=0 // pred_fallthru
    _
  %v24 = vld [vmem:[%s0] sm:$0xf]
  %v25 = vld [vmem:[%s0 + $0x4] sm:$0xf]
  %v26 = vld [vmem:[%s0 + $0x8] sm:$0xf]
  %v27 = vld [vmem:[%s0 + $0xc] sm:$0xf]
  %v28 = vld [vmem:[%s0 + $0x10] sm:$0xf]
  %v29 = vld [vmem:[%s0 + $0x14] sm:$0xf]
  %v30 = vld [vmem:[%s0 + $0x18] sm:$0xf]
  %v31 = vld [vmem:[%s0 + $0x1c] sm:$0xf]
  %v32 = vld [vmem:[%s1] sm:$0x3]
  %v33 = vld [vmem:[%s3] sm:$0x1]
  %v35 = vlaneseq
  %v36 = vshrl.u32 %v35, 7
  %v37 = vsub.s32 0, %v36
  %v38 = vrot.slane %v33, %v37
  %v48 = vunpack.c.l.b16 %v24
  %v49 = vunpack.c.l.b16 %v25
  %v50 = vunpack.c.l.b16 %v26
  %v51 = vunpack.c.l.b16 %v27
  %v52 = vunpack.c.l.b16 %v28
  %v53 = vunpack.c.l.b16 %v29
  %v54 = vunpack.c.l.b16 %v30
  %v55 = vunpack.c.l.b16 %v31
  %v56 = vpack.c.b16 %v49, %v48
  %v57 = vpack.c.b16 %v51, %v50
  %v58 = vpack.c.b16 %v53, %v52
  %v59 = vpack.c.b16 %v55, %v54
  %vm60 = vcmask 31744
  %v62 = vsel %vm60, %v56, 0
  %v65 = vsel %vm60, %v57, 0
  %v68 = vsel %vm60, %v58, 0
  %v71 = vsel %vm60, %v59, 0
  %vm73 = vcmask 1041408
  %v75 = vsel %vm73, %v32, 0
  %77 = vmatprep.subr.bf16.mxu0 0
  %78 = vmatpush1.bf16.msra.mxu0 0
  %79 = vmatprep.subr.bf16.mxu0 0
  %80 = vmatpush1.bf16.msra.mxu0 0
  %81 = vmatprep.subr.bf16.mxu0 0
  %82 = vmatpush1.bf16.msra.mxu0 0
  %83 = vmatprep.subr.bf16.mxu0 0
  %84 = vmatpush1.bf16.msra.mxu0 0
  %85 = vmatprep.subr.bf16.mxu0 0
  %86 = vmatpush1.bf16.msra.mxu0 0
  %87 = vmatprep.subr.bf16.mxu0 0
  %88 = vmatpush1.bf16.msra.mxu0 0
  %89 = vmatprep.subr.bf16.mxu0 0
  %90 = vmatpush1.bf16.msra.mxu0 0
  %91 = vmatprep.subr.bf16.mxu0 0
  %92 = vmatpush1.bf16.msra.mxu0 %v75
  %93 = vmatprep.subr.bf16.mxu0 0
  %94 = vmatpush2.bf16.msra.mxu0 0
  %95 = vmatprep.subr.bf16.mxu0 0
  %96 = vmatpush2.bf16.msra.mxu0 0
  %97 = vmatprep.subr.bf16.mxu0 0
  %98 = vmatpush2.bf16.msra.mxu0 0
  %99 = vmatprep.subr.bf16.mxu0 0
  %100 = vmatpush2.bf16.msra.mxu0 0
  %101 = vmatprep.subr.bf16.mxu0 0
  %102 = vmatpush2.bf16.msra.mxu0 0
  %103 = vmatprep.subr.bf16.mxu0 0
  %104 = vmatpush2.bf16.msra.mxu0 0
  %105 = vmatprep.subr.bf16.mxu0 0
  %106 = vmatpush2.bf16.msra.mxu0 0
  %107 = vmatprep.subr.bf16.mxu0 0
  %108 = vmatpush2.bf16.msra.mxu0 0
  %109 = vmatprep.mubr.bf16.mxu0 0
  %110 = vmatmul.mubr.bf16.gmra.mxu0 %v62
  %v111 = vpop.f32.mrf.mxu0
  %v112 = vadd.f32 %v38, %v111
  %v113 = vpop.f32.mrf.mxu0
  %v114 = vpop.f32.mrf.mxu0
  %v115 = vadd.f32 %v38, %v114
  %v116 = vpop.f32.mrf.mxu0
  %117 = vmatprep.mubr.bf16.mxu0 0
  %118 = vmatmul.mubr.bf16.gmra.mxu0 %v65
  %v119 = vpop.f32.mrf.mxu0
  %v120 = vadd.f32 %v38, %v119
  %v121 = vpop.f32.mrf.mxu0
  %v122 = vpop.f32.mrf.mxu0
  %v123 = vadd.f32 %v38, %v122
  %v124 = vpop.f32.mrf.mxu0
  %125 = vmatprep.mubr.bf16.mxu0 0
  %126 = vmatmul.mubr.bf16.gmra.mxu0 %v68
  %v127 = vpop.f32.mrf.mxu0
  %v128 = vadd.f32 %v38, %v127
  %v129 = vpop.f32.mrf.mxu0
  %v130 = vpop.f32.mrf.mxu0
  %v131 = vadd.f32 %v38, %v130
  %v132 = vpop.f32.mrf.mxu0
  %133 = vmatprep.mubr.bf16.mxu0 0
  %134 = vmatmul.mubr.bf16.gmra.mxu0 %v71
  %v135 = vpop.f32.mrf.mxu0
  %v136 = vadd.f32 %v38, %v135
  %v137 = vpop.f32.mrf.mxu0
  %v138 = vpop.f32.mrf.mxu0
  %v139 = vadd.f32 %v38, %v138
  %v140 = vpop.f32.mrf.mxu0
  %141 = vdwg.mxu0
  %v142 = vld [vmem:[%s2] sm:$0xf]
  %v143 = vld [vmem:[%s2 + $0x4] sm:$0xf]
  %v144 = vld [vmem:[%s2 + $0x8] sm:$0xf]
  %v145 = vld [vmem:[%s2 + $0xc] sm:$0xf]
  %v150 = vunpack.c.l.b16 %v142
  %v151 = vunpack.c.l.b16 %v143
  %v152 = vunpack.c.l.b16 %v144
  %v153 = vunpack.c.l.b16 %v145
  %v154 = vpack.c.b16 %v151, %v150
  %v155 = vpack.c.b16 %v153, %v152
  %vm158 = vcmask 261120
  %v160 = vsel %vm158, 0, 0
  %162 = vmatprep.subr.bf16.mxu0 0
  %163 = vmatpush1.bf16.msra.mxu0 0
  %164 = vmatprep.subr.bf16.mxu0 0
  %165 = vmatpush1.bf16.msra.mxu0 0
  %166 = vmatprep.subr.bf16.mxu0 0
  %167 = vmatpush1.bf16.msra.mxu0 0
  %168 = vmatprep.subr.bf16.mxu0 0
  %169 = vmatpush1.bf16.msra.mxu0 0
  %170 = vmatprep.subr.bf16.mxu0 0
  %171 = vmatpush1.bf16.msra.mxu0 0
  %172 = vmatprep.subr.bf16.mxu0 0
  %173 = vmatpush1.bf16.msra.mxu0 0
  %174 = vmatprep.subr.bf16.mxu0 0
  %175 = vmatpush1.bf16.msra.mxu0 %v155
  %176 = vmatprep.subr.bf16.mxu0 0
  %177 = vmatpush1.bf16.msra.mxu0 %v154
  %178 = vmatprep.subr.bf16.mxu0 0
  %179 = vmatpush2.bf16.msra.mxu0 0
  %180 = vmatprep.subr.bf16.mxu0 0
  %181 = vmatpush2.bf16.msra.mxu0 0
  %182 = vmatprep.subr.bf16.mxu0 0
  %183 = vmatpush2.bf16.msra.mxu0 0
  %184 = vmatprep.subr.bf16.mxu0 0
  %185 = vmatpush2.bf16.msra.mxu0 0
  %186 = vmatprep.subr.bf16.mxu0 0
  %187 = vmatpush2.bf16.msra.mxu0 0
  %188 = vmatprep.subr.bf16.mxu0 0
  %189 = vmatpush2.bf16.msra.mxu0 0
  %190 = vmatprep.subr.bf16.mxu0 0
  %191 = vmatpush2.bf16.msra.mxu0 0
  %192 = vmatprep.subr.bf16.mxu0 0
  %193 = vmatpush2.bf16.msra.mxu0 0
  %194 = vmatprep.mubr.bf16.mxu0 0
  %195 = vmatmul.mubr.bf16.gmra.mxu0 %v160
  %v196 = vpop.f32.mrf.mxu0
  %v197 = vadd.f32 0.0, %v196
  %v198 = vpop.f32.mrf.mxu0
  %v199 = vpop.f32.mrf.mxu0
  %v200 = vpop.f32.mrf.mxu0
  %201 = vdwg.mxu0
  %v202 = vadd.f32 %v112, %v197
  %v203 = vxor.u32 %v202, 2147483648
  %v204 = vmul.f32 %v203, 1.442695
  %v205 = vpow.pop %v204
  %v206 = vadd.f32 %v205, 1.0
  %v207 = vrcp.pop %v206
  %v208 = vmul.f32 1.0, %v207
  %v209 = vtanh.pop %v202
  %v210 = vmul.f32 %v208, 0.0
  %212 = vrot.lane.b32.xlu0 %v209, 64
  %v213 = vpop.permute.xlu0 %212
  %v215 = vmul.f32 %v208, %v213
  %217 = vrot.lane.b32.xlu0 %v215, 32
  %v218 = vpop.permute.xlu0 %217
  %v220 = vadd.f32 %v210, %v218
  %v221 = vtanh.pop %v220
  %223 = vrot.lane.b32.xlu0 %v221, 64
  %v224 = vpop.permute.xlu0 %223
  %v226 = vmul.f32 %v208, %v224
  %v227 = vpack.c.bf16 %v226, %v226
  %229 = vrot.lane.b32.xlu0 %v227, 32
  %v230 = vpop.permute.xlu0 %229
  %v232 = vsel %vm158, %v230, 0
  %234 = vmatprep.subr.bf16.mxu0 0
  %235 = vmatpush1.bf16.msra.mxu0 0
  %236 = vmatprep.subr.bf16.mxu0 0
  %237 = vmatpush1.bf16.msra.mxu0 0
  %238 = vmatprep.subr.bf16.mxu0 0
  %239 = vmatpush1.bf16.msra.mxu0 0
  %240 = vmatprep.subr.bf16.mxu0 0
  %241 = vmatpush1.bf16.msra.mxu0 0
  %242 = vmatprep.subr.bf16.mxu0 0
  %243 = vmatpush1.bf16.msra.mxu0 0
  %244 = vmatprep.subr.bf16.mxu0 0
  %245 = vmatpush1.bf16.msra.mxu0 0
  %246 = vmatprep.subr.bf16.mxu0 0
  %247 = vmatpush1.bf16.msra.mxu0 %v155
  %248 = vmatprep.subr.bf16.mxu0 0
  %249 = vmatpush1.bf16.msra.mxu0 %v154
  %250 = vmatprep.subr.bf16.mxu0 0
  %251 = vmatpush2.bf16.msra.mxu0 0
  %252 = vmatprep.subr.bf16.mxu0 0
  %253 = vmatpush2.bf16.msra.mxu0 0
  %254 = vmatprep.subr.bf16.mxu0 0
  %255 = vmatpush2.bf16.msra.mxu0 0
  %256 = vmatprep.subr.bf16.mxu0 0
  %257 = vmatpush2.bf16.msra.mxu0 0
  %258 = vmatprep.subr.bf16.mxu0 0
  %259 = vmatpush2.bf16.msra.mxu0 0
  %260 = vmatprep.subr.bf16.mxu0 0
  %261 = vmatpush2.bf16.msra.mxu0 0
  %262 = vmatprep.subr.bf16.mxu0 0
  %263 = vmatpush2.bf16.msra.mxu0 0
  %264 = vmatprep.subr.bf16.mxu0 0
  %265 = vmatpush2.bf16.msra.mxu0 0
  %266 = vmatprep.mubr.bf16.mxu0 0
  %267 = vmatmul.mubr.bf16.gmra.mxu0 %v232
  %v268 = vpop.f32.mrf.mxu0
  %v269 = vadd.f32 0.0, %v268
  %v270 = vpop.f32.mrf.mxu0
  %v271 = vpop.f32.mrf.mxu0
  %v272 = vpop.f32.mrf.mxu0
  %273 = vdwg.mxu0
  %v274 = vadd.f32 %v115, %v269
  %v275 = vxor.u32 %v274, 2147483648
  %v276 = vmul.f32 %v275, 1.442695
  %v277 = vpow.pop %v276
  %v278 = vadd.f32 %v277, 1.0
  %v279 = vrcp.pop %v278
  %v280 = vmul.f32 1.0, %v279
  %v281 = vtanh.pop %v274
  %v282 = vmul.f32 %v280, %v220
  %284 = vrot.lane.b32.xlu0 %v281, 64
  %v285 = vpop.permute.xlu0 %284
  %v287 = vmul.f32 %v280, %v285
  %289 = vrot.lane.b32.xlu0 %v287, 32
  %v290 = vpop.permute.xlu0 %289
  %v292 = vadd.f32 %v282, %v290
  %v293 = vtanh.pop %v292
  %295 = vrot.lane.b32.xlu0 %v293, 64
  %v296 = vpop.permute.xlu0 %295
  %v298 = vmul.f32 %v280, %v296
  %v299 = vpack.c.bf16 %v298, %v298
  %301 = vrot.lane.b32.xlu0 %v299, 32
  %v302 = vpop.permute.xlu0 %301
  %v304 = vsel %vm158, %v302, 0
  %306 = vmatprep.subr.bf16.mxu0 0
  %307 = vmatpush1.bf16.msra.mxu0 0
  %308 = vmatprep.subr.bf16.mxu0 0
  %309 = vmatpush1.bf16.msra.mxu0 0
  %310 = vmatprep.subr.bf16.mxu0 0
  %311 = vmatpush1.bf16.msra.mxu0 0
  %312 = vmatprep.subr.bf16.mxu0 0
  %313 = vmatpush1.bf16.msra.mxu0 0
  %314 = vmatprep.subr.bf16.mxu0 0
  %315 = vmatpush1.bf16.msra.mxu0 0
  %316 = vmatprep.subr.bf16.mxu0 0
  %317 = vmatpush1.bf16.msra.mxu0 0
  %318 = vmatprep.subr.bf16.mxu0 0
  %319 = vmatpush1.bf16.msra.mxu0 %v155
  %320 = vmatprep.subr.bf16.mxu0 0
  %321 = vmatpush1.bf16.msra.mxu0 %v154
  %322 = vmatprep.subr.bf16.mxu0 0
  %323 = vmatpush2.bf16.msra.mxu0 0
  %324 = vmatprep.subr.bf16.mxu0 0
  %325 = vmatpush2.bf16.msra.mxu0 0
  %326 = vmatprep.subr.bf16.mxu0 0
  %327 = vmatpush2.bf16.msra.mxu0 0
  %328 = vmatprep.subr.bf16.mxu0 0
  %329 = vmatpush2.bf16.msra.mxu0 0
  %330 = vmatprep.subr.bf16.mxu0 0
  %331 = vmatpush2.bf16.msra.mxu0 0
  %332 = vmatprep.subr.bf16.mxu0 0
  %333 = vmatpush2.bf16.msra.mxu0 0
  %334 = vmatprep.subr.bf16.mxu0 0
  %335 = vmatpush2.bf16.msra.mxu0 0
  %336 = vmatprep.subr.bf16.mxu0 0
  %337 = vmatpush2.bf16.msra.mxu0 0
  %338 = vmatprep.mubr.bf16.mxu0 0
  %339 = vmatmul.mubr.bf16.gmra.mxu0 %v304
  %v340 = vpop.f32.mrf.mxu0
  %v341 = vadd.f32 0.0, %v340
  %v342 = vpop.f32.mrf.mxu0
  %v343 = vpop.f32.mrf.mxu0
  %v344 = vpop.f32.mrf.mxu0
  %345 = vdwg.mxu0
  %v346 = vadd.f32 %v120, %v341
  %v347 = vxor.u32 %v346, 2147483648
  %v348 = vmul.f32 %v347, 1.442695
  %v349 = vpow.pop %v348
  %v350 = vadd.f32 %v349, 1.0
  %v351 = vrcp.pop %v350
  %v352 = vmul.f32 1.0, %v351
  %v353 = vtanh.pop %v346
  %v354 = vmul.f32 %v352, %v292
  %356 = vrot.lane.b32.xlu0 %v353, 64
  %v357 = vpop.permute.xlu0 %356
  %v359 = vmul.f32 %v352, %v357
  %361 = vrot.lane.b32.xlu0 %v359, 32
  %v362 = vpop.permute.xlu0 %361
  %v364 = vadd.f32 %v354, %v362
  %v365 = vtanh.pop %v364
  %367 = vrot.lane.b32.xlu0 %v365, 64
  %v368 = vpop.permute.xlu0 %367
  %v370 = vmul.f32 %v352, %v368
  %v371 = vpack.c.bf16 %v370, %v370
  %373 = vrot.lane.b32.xlu0 %v371, 32
  %v374 = vpop.permute.xlu0 %373
  %v376 = vsel %vm158, %v374, 0
  %378 = vmatprep.subr.bf16.mxu0 0
  %379 = vmatpush1.bf16.msra.mxu0 0
  %380 = vmatprep.subr.bf16.mxu0 0
  %381 = vmatpush1.bf16.msra.mxu0 0
  %382 = vmatprep.subr.bf16.mxu0 0
  %383 = vmatpush1.bf16.msra.mxu0 0
  %384 = vmatprep.subr.bf16.mxu0 0
  %385 = vmatpush1.bf16.msra.mxu0 0
  %386 = vmatprep.subr.bf16.mxu0 0
  %387 = vmatpush1.bf16.msra.mxu0 0
  %388 = vmatprep.subr.bf16.mxu0 0
  %389 = vmatpush1.bf16.msra.mxu0 0
  %390 = vmatprep.subr.bf16.mxu0 0
  %391 = vmatpush1.bf16.msra.mxu0 %v155
  %392 = vmatprep.subr.bf16.mxu0 0
  %393 = vmatpush1.bf16.msra.mxu0 %v154
  %394 = vmatprep.subr.bf16.mxu0 0
  %395 = vmatpush2.bf16.msra.mxu0 0
  %396 = vmatprep.subr.bf16.mxu0 0
  %397 = vmatpush2.bf16.msra.mxu0 0
  %398 = vmatprep.subr.bf16.mxu0 0
  %399 = vmatpush2.bf16.msra.mxu0 0
  %400 = vmatprep.subr.bf16.mxu0 0
  %401 = vmatpush2.bf16.msra.mxu0 0
  %402 = vmatprep.subr.bf16.mxu0 0
  %403 = vmatpush2.bf16.msra.mxu0 0
  %404 = vmatprep.subr.bf16.mxu0 0
  %405 = vmatpush2.bf16.msra.mxu0 0
  %406 = vmatprep.subr.bf16.mxu0 0
  %407 = vmatpush2.bf16.msra.mxu0 0
  %408 = vmatprep.subr.bf16.mxu0 0
  %409 = vmatpush2.bf16.msra.mxu0 0
  %410 = vmatprep.mubr.bf16.mxu0 0
  %411 = vmatmul.mubr.bf16.gmra.mxu0 %v376
  %v412 = vpop.f32.mrf.mxu0
  %v413 = vadd.f32 0.0, %v412
  %v414 = vpop.f32.mrf.mxu0
  %v415 = vpop.f32.mrf.mxu0
  %v416 = vpop.f32.mrf.mxu0
  %417 = vdwg.mxu0
  %v418 = vadd.f32 %v123, %v413
  %v419 = vxor.u32 %v418, 2147483648
  %v420 = vmul.f32 %v419, 1.442695
  %v421 = vpow.pop %v420
  %v422 = vadd.f32 %v421, 1.0
  %v423 = vrcp.pop %v422
  %v424 = vmul.f32 1.0, %v423
  %v425 = vtanh.pop %v418
  %v426 = vmul.f32 %v424, %v364
  %428 = vrot.lane.b32.xlu0 %v425, 64
  %v429 = vpop.permute.xlu0 %428
  %v431 = vmul.f32 %v424, %v429
  %433 = vrot.lane.b32.xlu0 %v431, 32
  %v434 = vpop.permute.xlu0 %433
  %v436 = vadd.f32 %v426, %v434
  %v437 = vtanh.pop %v436
  %439 = vrot.lane.b32.xlu0 %v437, 64
  %v440 = vpop.permute.xlu0 %439
  %v442 = vmul.f32 %v424, %v440
  %v443 = vpack.c.bf16 %v442, %v442
  %445 = vrot.lane.b32.xlu0 %v443, 32
  %v446 = vpop.permute.xlu0 %445
  %v448 = vsel %vm158, %v446, 0
  %450 = vmatprep.subr.bf16.mxu0 0
  %451 = vmatpush1.bf16.msra.mxu0 0
  %452 = vmatprep.subr.bf16.mxu0 0
  %453 = vmatpush1.bf16.msra.mxu0 0
  %454 = vmatprep.subr.bf16.mxu0 0
  %455 = vmatpush1.bf16.msra.mxu0 0
  %456 = vmatprep.subr.bf16.mxu0 0
  %457 = vmatpush1.bf16.msra.mxu0 0
  %458 = vmatprep.subr.bf16.mxu0 0
  %459 = vmatpush1.bf16.msra.mxu0 0
  %460 = vmatprep.subr.bf16.mxu0 0
  %461 = vmatpush1.bf16.msra.mxu0 0
  %462 = vmatprep.subr.bf16.mxu0 0
  %463 = vmatpush1.bf16.msra.mxu0 %v155
  %464 = vmatprep.subr.bf16.mxu0 0
  %465 = vmatpush1.bf16.msra.mxu0 %v154
  %466 = vmatprep.subr.bf16.mxu0 0
  %467 = vmatpush2.bf16.msra.mxu0 0
  %468 = vmatprep.subr.bf16.mxu0 0
  %469 = vmatpush2.bf16.msra.mxu0 0
  %470 = vmatprep.subr.bf16.mxu0 0
  %471 = vmatpush2.bf16.msra.mxu0 0
  %472 = vmatprep.subr.bf16.mxu0 0
  %473 = vmatpush2.bf16.msra.mxu0 0
  %474 = vmatprep.subr.bf16.mxu0 0
  %475 = vmatpush2.bf16.msra.mxu0 0
  %476 = vmatprep.subr.bf16.mxu0 0
  %477 = vmatpush2.bf16.msra.mxu0 0
  %478 = vmatprep.subr.bf16.mxu0 0
  %479 = vmatpush2.bf16.msra.mxu0 0
  %480 = vmatprep.subr.bf16.mxu0 0
  %481 = vmatpush2.bf16.msra.mxu0 0
  %482 = vmatprep.mubr.bf16.mxu0 0
  %483 = vmatmul.mubr.bf16.gmra.mxu0 %v448
  %v484 = vpop.f32.mrf.mxu0
  %v485 = vadd.f32 0.0, %v484
  %v486 = vpop.f32.mrf.mxu0
  %v487 = vpop.f32.mrf.mxu0
  %v488 = vpop.f32.mrf.mxu0
  %489 = vdwg.mxu0
  %v490 = vadd.f32 %v128, %v485
  %v491 = vxor.u32 %v490, 2147483648
  %v492 = vmul.f32 %v491, 1.442695
  %v493 = vpow.pop %v492
  %v494 = vadd.f32 %v493, 1.0
  %v495 = vrcp.pop %v494
  %v496 = vmul.f32 1.0, %v495
  %v497 = vtanh.pop %v490
  %v498 = vmul.f32 %v496, %v436
  %500 = vrot.lane.b32.xlu0 %v497, 64
  %v501 = vpop.permute.xlu0 %500
  %v503 = vmul.f32 %v496, %v501
  %505 = vrot.lane.b32.xlu0 %v503, 32
  %v506 = vpop.permute.xlu0 %505
  %v508 = vadd.f32 %v498, %v506
  %v509 = vtanh.pop %v508
  %511 = vrot.lane.b32.xlu0 %v509, 64
  %v512 = vpop.permute.xlu0 %511
  %v514 = vmul.f32 %v496, %v512
  %v515 = vpack.c.bf16 %v514, %v514
  %517 = vrot.lane.b32.xlu0 %v515, 32
  %v518 = vpop.permute.xlu0 %517
  %v520 = vsel %vm158, %v518, 0
  %522 = vmatprep.subr.bf16.mxu0 0
  %523 = vmatpush1.bf16.msra.mxu0 0
  %524 = vmatprep.subr.bf16.mxu0 0
  %525 = vmatpush1.bf16.msra.mxu0 0
  %526 = vmatprep.subr.bf16.mxu0 0
  %527 = vmatpush1.bf16.msra.mxu0 0
  %528 = vmatprep.subr.bf16.mxu0 0
  %529 = vmatpush1.bf16.msra.mxu0 0
  %530 = vmatprep.subr.bf16.mxu0 0
  %531 = vmatpush1.bf16.msra.mxu0 0
  %532 = vmatprep.subr.bf16.mxu0 0
  %533 = vmatpush1.bf16.msra.mxu0 0
  %534 = vmatprep.subr.bf16.mxu0 0
  %535 = vmatpush1.bf16.msra.mxu0 %v155
  %536 = vmatprep.subr.bf16.mxu0 0
  %537 = vmatpush1.bf16.msra.mxu0 %v154
  %538 = vmatprep.subr.bf16.mxu0 0
  %539 = vmatpush2.bf16.msra.mxu0 0
  %540 = vmatprep.subr.bf16.mxu0 0
  %541 = vmatpush2.bf16.msra.mxu0 0
  %542 = vmatprep.subr.bf16.mxu0 0
  %543 = vmatpush2.bf16.msra.mxu0 0
  %544 = vmatprep.subr.bf16.mxu0 0
  %545 = vmatpush2.bf16.msra.mxu0 0
  %546 = vmatprep.subr.bf16.mxu0 0
  %547 = vmatpush2.bf16.msra.mxu0 0
  %548 = vmatprep.subr.bf16.mxu0 0
  %549 = vmatpush2.bf16.msra.mxu0 0
  %550 = vmatprep.subr.bf16.mxu0 0
  %551 = vmatpush2.bf16.msra.mxu0 0
  %552 = vmatprep.subr.bf16.mxu0 0
  %553 = vmatpush2.bf16.msra.mxu0 0
  %554 = vmatprep.mubr.bf16.mxu0 0
  %555 = vmatmul.mubr.bf16.gmra.mxu0 %v520
  %v556 = vpop.f32.mrf.mxu0
  %v557 = vadd.f32 0.0, %v556
  %v558 = vpop.f32.mrf.mxu0
  %v559 = vpop.f32.mrf.mxu0
  %v560 = vpop.f32.mrf.mxu0
  %561 = vdwg.mxu0
  %v562 = vadd.f32 %v131, %v557
  %v563 = vxor.u32 %v562, 2147483648
  %v564 = vmul.f32 %v563, 1.442695
  %v565 = vpow.pop %v564
  %v566 = vadd.f32 %v565, 1.0
  %v567 = vrcp.pop %v566
  %v568 = vmul.f32 1.0, %v567
  %v569 = vtanh.pop %v562
  %v570 = vmul.f32 %v568, %v508
  %572 = vrot.lane.b32.xlu0 %v569, 64
  %v573 = vpop.permute.xlu0 %572
  %v575 = vmul.f32 %v568, %v573
  %577 = vrot.lane.b32.xlu0 %v575, 32
  %v578 = vpop.permute.xlu0 %577
  %v580 = vadd.f32 %v570, %v578
  %v581 = vtanh.pop %v580
  %583 = vrot.lane.b32.xlu0 %v581, 64
  %v584 = vpop.permute.xlu0 %583
  %v586 = vmul.f32 %v568, %v584
  %v587 = vpack.c.bf16 %v586, %v586
  %589 = vrot.lane.b32.xlu0 %v587, 32
  %v590 = vpop.permute.xlu0 %589
  %v592 = vsel %vm158, %v590, 0
  %594 = vmatprep.subr.bf16.mxu0 0
  %595 = vmatpush1.bf16.msra.mxu0 0
  %596 = vmatprep.subr.bf16.mxu0 0
  %597 = vmatpush1.bf16.msra.mxu0 0
  %598 = vmatprep.subr.bf16.mxu0 0
  %599 = vmatpush1.bf16.msra.mxu0 0
  %600 = vmatprep.subr.bf16.mxu0 0
  %601 = vmatpush1.bf16.msra.mxu0 0
  %602 = vmatprep.subr.bf16.mxu0 0
  %603 = vmatpush1.bf16.msra.mxu0 0
  %604 = vmatprep.subr.bf16.mxu0 0
  %605 = vmatpush1.bf16.msra.mxu0 0
  %606 = vmatprep.subr.bf16.mxu0 0
  %607 = vmatpush1.bf16.msra.mxu0 %v155
  %608 = vmatprep.subr.bf16.mxu0 0
  %609 = vmatpush1.bf16.msra.mxu0 %v154
  %610 = vmatprep.subr.bf16.mxu0 0
  %611 = vmatpush2.bf16.msra.mxu0 0
  %612 = vmatprep.subr.bf16.mxu0 0
  %613 = vmatpush2.bf16.msra.mxu0 0
  %614 = vmatprep.subr.bf16.mxu0 0
  %615 = vmatpush2.bf16.msra.mxu0 0
  %616 = vmatprep.subr.bf16.mxu0 0
  %617 = vmatpush2.bf16.msra.mxu0 0
  %618 = vmatprep.subr.bf16.mxu0 0
  %619 = vmatpush2.bf16.msra.mxu0 0
  %620 = vmatprep.subr.bf16.mxu0 0
  %621 = vmatpush2.bf16.msra.mxu0 0
  %622 = vmatprep.subr.bf16.mxu0 0
  %623 = vmatpush2.bf16.msra.mxu0 0
  %624 = vmatprep.subr.bf16.mxu0 0
  %625 = vmatpush2.bf16.msra.mxu0 0
  %626 = vmatprep.mubr.bf16.mxu0 0
  %627 = vmatmul.mubr.bf16.gmra.mxu0 %v592
  %v628 = vpop.f32.mrf.mxu0
  %v629 = vadd.f32 0.0, %v628
  %v630 = vpop.f32.mrf.mxu0
  %v631 = vpop.f32.mrf.mxu0
  %v632 = vpop.f32.mrf.mxu0
  %633 = vdwg.mxu0
  %v634 = vadd.f32 %v136, %v629
  %v635 = vxor.u32 %v634, 2147483648
  %v636 = vmul.f32 %v635, 1.442695
  %v637 = vpow.pop %v636
  %v638 = vadd.f32 %v637, 1.0
  %v639 = vrcp.pop %v638
  %v640 = vmul.f32 1.0, %v639
  %v641 = vtanh.pop %v634
  %v642 = vmul.f32 %v640, %v580
  %644 = vrot.lane.b32.xlu0 %v641, 64
  %v645 = vpop.permute.xlu0 %644
  %v647 = vmul.f32 %v640, %v645
  %649 = vrot.lane.b32.xlu0 %v647, 32
  %v650 = vpop.permute.xlu0 %649
  %v652 = vadd.f32 %v642, %v650
  %v653 = vtanh.pop %v652
  %655 = vrot.lane.b32.xlu0 %v653, 64
  %v656 = vpop.permute.xlu0 %655
  %v658 = vmul.f32 %v640, %v656
  %v659 = vpack.c.bf16 %v658, %v658
  %661 = vrot.lane.b32.xlu0 %v659, 32
  %v662 = vpop.permute.xlu0 %661
  %v664 = vsel %vm158, %v662, 0
  %666 = vmatprep.subr.bf16.mxu0 0
  %667 = vmatpush1.bf16.msra.mxu0 0
  %668 = vmatprep.subr.bf16.mxu0 0
  %669 = vmatpush1.bf16.msra.mxu0 0
  %670 = vmatprep.subr.bf16.mxu0 0
  %671 = vmatpush1.bf16.msra.mxu0 0
  %672 = vmatprep.subr.bf16.mxu0 0
  %673 = vmatpush1.bf16.msra.mxu0 0
  %674 = vmatprep.subr.bf16.mxu0 0
  %675 = vmatpush1.bf16.msra.mxu0 0
  %676 = vmatprep.subr.bf16.mxu0 0
  %677 = vmatpush1.bf16.msra.mxu0 0
  %678 = vmatprep.subr.bf16.mxu0 0
  %679 = vmatpush1.bf16.msra.mxu0 %v155
  %680 = vmatprep.subr.bf16.mxu0 0
  %681 = vmatpush1.bf16.msra.mxu0 %v154
  %682 = vmatprep.subr.bf16.mxu0 0
  %683 = vmatpush2.bf16.msra.mxu0 0
  %684 = vmatprep.subr.bf16.mxu0 0
  %685 = vmatpush2.bf16.msra.mxu0 0
  %686 = vmatprep.subr.bf16.mxu0 0
  %687 = vmatpush2.bf16.msra.mxu0 0
  %688 = vmatprep.subr.bf16.mxu0 0
  %689 = vmatpush2.bf16.msra.mxu0 0
  %690 = vmatprep.subr.bf16.mxu0 0
  %691 = vmatpush2.bf16.msra.mxu0 0
  %692 = vmatprep.subr.bf16.mxu0 0
  %693 = vmatpush2.bf16.msra.mxu0 0
  %694 = vmatprep.subr.bf16.mxu0 0
  %695 = vmatpush2.bf16.msra.mxu0 0
  %696 = vmatprep.subr.bf16.mxu0 0
  %697 = vmatpush2.bf16.msra.mxu0 0
  %698 = vmatprep.mubr.bf16.mxu0 0
  %699 = vmatmul.mubr.bf16.gmra.mxu0 %v664
  %v700 = vpop.f32.mrf.mxu0
  %v701 = vadd.f32 0.0, %v700
  %v702 = vpop.f32.mrf.mxu0
  %v703 = vpop.f32.mrf.mxu0
  %v704 = vpop.f32.mrf.mxu0
  %705 = vdwg.mxu0
  %v706 = vadd.f32 %v139, %v701
  %v707 = vxor.u32 %v706, 2147483648
  %v708 = vmul.f32 %v707, 1.442695
  %v709 = vpow.pop %v708
  %v710 = vadd.f32 %v709, 1.0
  %v711 = vrcp.pop %v710
  %v712 = vmul.f32 1.0, %v711
  %v713 = vtanh.pop %v706
  %v714 = vmul.f32 %v712, %v652
  %716 = vrot.lane.b32.xlu0 %v713, 64
  %v717 = vpop.permute.xlu0 %716
  %v719 = vmul.f32 %v712, %v717
  %721 = vrot.lane.b32.xlu0 %v719, 32
  %v722 = vpop.permute.xlu0 %721
  %v724 = vadd.f32 %v714, %v722
  %v725 = vtanh.pop %v724
  %727 = vrot.lane.b32.xlu0 %v725, 64
  %v728 = vpop.permute.xlu0 %727
  %v730 = vmul.f32 %v712, %v728
  %v731 = vpack.c.bf16 %v730, %v730
  %v732 = vld [vmem:[%s4] sm:$0xf]
  %v733 = vld [vmem:[%s4 + $0x4] sm:$0xf]
  %v734 = vld [vmem:[%s4 + $0x8] sm:$0xf]
  %v735 = vld [vmem:[%s4 + $0xc] sm:$0xf]
  %v736 = vld [vmem:[%s5] sm:$0x1]
  %v738 = vlaneseq
  %v739 = vshrl.u32 %v738, 7
  %v740 = vsub.s32 0, %v739
  %v741 = vrot.slane %v736, %v740
  %744 = vrot.lane.b32.xlu0 %v731, 32
  %v745 = vpop.permute.xlu0 %744
  %v750 = vunpack.c.l.b16 %v732
  %v751 = vunpack.c.l.b16 %v733
  %v752 = vunpack.c.l.b16 %v734
  %v753 = vunpack.c.l.b16 %v735
  %v754 = vpack.c.b16 %v751, %v750
  %v755 = vpack.c.b16 %v753, %v752
  %v759 = vsel %vm158, %v745, 0
  %761 = vmatprep.subr.bf16.mxu0 0
  %762 = vmatpush1.bf16.msra.mxu0 0
  %763 = vmatprep.subr.bf16.mxu0 0
  %764 = vmatpush1.bf16.msra.mxu0 0
  %765 = vmatprep.subr.bf16.mxu0 0
  %766 = vmatpush1.bf16.msra.mxu0 0
  %767 = vmatprep.subr.bf16.mxu0 0
  %768 = vmatpush1.bf16.msra.mxu0 0
  %769 = vmatprep.subr.bf16.mxu0 0
  %770 = vmatpush1.bf16.msra.mxu0 0
  %771 = vmatprep.subr.bf16.mxu0 0
  %772 = vmatpush1.bf16.msra.mxu0 0
  %773 = vmatprep.subr.bf16.mxu0 0
  %774 = vmatpush1.bf16.msra.mxu0 %v755
  %775 = vmatprep.subr.bf16.mxu0 0
  %776 = vmatpush1.bf16.msra.mxu0 %v754
  %777 = vmatprep.subr.bf16.mxu0 0
  %778 = vmatpush2.bf16.msra.mxu0 0
  %779 = vmatprep.subr.bf16.mxu0 0
  %780 = vmatpush2.bf16.msra.mxu0 0
  %781 = vmatprep.subr.bf16.mxu0 0
  %782 = vmatpush2.bf16.msra.mxu0 0
  %783 = vmatprep.subr.bf16.mxu0 0
  %784 = vmatpush2.bf16.msra.mxu0 0
  %785 = vmatprep.subr.bf16.mxu0 0
  %786 = vmatpush2.bf16.msra.mxu0 0
  %787 = vmatprep.subr.bf16.mxu0 0
  %788 = vmatpush2.bf16.msra.mxu0 0
  %789 = vmatprep.subr.bf16.mxu0 0
  %790 = vmatpush2.bf16.msra.mxu0 0
  %791 = vmatprep.subr.bf16.mxu0 0
  %792 = vmatpush2.bf16.msra.mxu0 0
  %793 = vmatprep.mubr.bf16.mxu0 0
  %794 = vmatmul.mubr.bf16.gmra.mxu0 %v759
  %v795 = vpop.f32.mrf.mxu0
  %v796 = vadd.f32 %v741, %v795
  %v797 = vpop.f32.mrf.mxu0
  %v798 = vpop.f32.mrf.mxu0
  %v799 = vpop.f32.mrf.mxu0
  %800 = vdwg.mxu0
  %801 = vst [vmem:[%s6] sm:$0xff] %v796
  // Predicated region
  $region26: #{lstm_forward.1} parent=0 // pred_check
    _
  $region27: #{lstm_forward.1} parent=0 // pred_check_branch
    %803 = sbr.rel (0) target = $region29
  $region28: #{lstm_forward.1} parent=0 // pred_region
    _
  $region29: #{lstm_forward.1} parent=0 // pred_fallthru
    _
  // Predicated region
  $region30: #{lstm_forward.1} parent=0 // pred_check
    _
  $region31: #{lstm_forward.1} parent=0 // pred_check_branch
    %805 = sbr.rel (0) target = $region33
  $region32: #{lstm_forward.1} parent=0 // pred_region
    _
  $region33: #{lstm_forward.1} parent=0 // pred_fallthru
    _

</llo_original>
